<compile_context>
chip_gen: v5e
topology: v5e:2x2
jax: 0.10.0
libtpu: 0.0.40
codegen_flags: <defaults>
</compile_context>

<pallas_src>
import functools
import math

import jax
import jax.numpy as jnp
from jax.experimental import pallas as pl
from jax.experimental.pallas import tpu as pltpu

_BN_EPS = 1e-5


def _round_up(x, m):
    return (x + m - 1) // m * m


@functools.lru_cache(maxsize=1)
def _vmem_limit_bytes():
    """Generation-aware VMEM budget: 3/4 of physical capacity (48 MiB v7x, 96 MiB v5e/v6e)."""
    cap = None
    try:
        info = pltpu.get_tpu_info()
        cap = getattr(info, "vmem_capacity_bytes", None)
    except Exception:
        cap = None
    if not cap:
        cap = 64 * 1024 * 1024          # conservative fallback = v7x physical per-TC VMEM
    return int(cap) * 3 // 4            # headroom for double-buffering + compiler scratch


# -------------------- fused per-block Pallas kernel --------------------

def _make_block_kernel(rows_true, rows_pad, fuse_heads):
    """Conv-as-GEMM + BatchNorm(train, batch stats) + ReLU, optionally + fused fc heads.

    Everything is resident in VMEM for a single grid step, so the batch statistics are computed
    directly from the f32 GEMM result (centered variance, no E[x^2]-E[x]^2 cancellation).
    """
    inv_rows = 1.0 / float(rows_true)

    def _bn_relu(y, gamma, beta):
        # Zero-padded rows contribute 0 to the sum -> mean is exact with the true divisor.
        mean = jnp.sum(y, axis=0, keepdims=True) * inv_rows
        cent = y - mean
        if rows_pad != rows_true:
            ridx = jax.lax.broadcasted_iota(jnp.int32, y.shape, 0)
            cent = jnp.where(ridx < rows_true, cent, 0.0)     # mask padded rows out of the var
        var = jnp.sum(cent * cent, axis=0, keepdims=True) * inv_rows   # biased var (train-mode BN)
        scale = gamma * jax.lax.rsqrt(var + _BN_EPS)
        shift = beta - mean * scale
        # NOTE: the conv bias is exactly cancelled by the mean subtraction -> intentionally unused.
        return jnp.maximum(y * scale + shift, 0.0)

    if fuse_heads:
        def kernel(p_ref, w_ref, g_ref, b_ref, wh_ref, bh_ref, o_ref):
            y = jnp.dot(p_ref[...], w_ref[...], preferred_element_type=jnp.float32)
            h = _bn_relu(y, g_ref[...], b_ref[...])           # (rows_pad, Cp) f32
            o_ref[...] = (jnp.dot(h.astype(jnp.bfloat16), wh_ref[...],
                                  preferred_element_type=jnp.float32) + bh_ref[...])
    else:
        def kernel(p_ref, w_ref, g_ref, b_ref, o_ref):
            y = jnp.dot(p_ref[...], w_ref[...], preferred_element_type=jnp.float32)
            o_ref[...] = _bn_relu(y, g_ref[...], b_ref[...]).astype(o_ref.dtype)
    return kernel


def _fused_block_call(patches, w2d, gamma_p, beta_p, rows_true, heads=None):
    """One pallas_call per encoder block: GEMM + BN + ReLU (+ optional fc heads)."""
    Rp, Kp = patches.shape
    Cp = w2d.shape[1]
    vlim = _vmem_limit_bytes()

    def fullspec(shape):
        return pl.BlockSpec(shape, lambda i: (0,) * len(shape))

    in_arrays = [patches, w2d, gamma_p, beta_p]
    in_specs = [fullspec((Rp, Kp)), fullspec((Kp, Cp)),
                fullspec((1, Cp)), fullspec((1, Cp))]
    flops = 2 * Rp * Kp * Cp + 8 * Rp * Cp
    bytes_accessed = (Rp * Kp + Kp * Cp) * 2 + 2 * Cp * 4
    est_vmem = 2 * 2 * (Rp * Kp + Kp * Cp) + 6 * 4 * Rp * Cp   # rough double-buffered estimate

    if heads is None:
        out_shape = jax.ShapeDtypeStruct((Rp, Cp), jnp.bfloat16)   # bf16 inter-block activation
        out_specs = fullspec((Rp, Cp))
        bytes_accessed += Rp * Cp * 2
        est_vmem += 2 * 2 * Rp * Cp
    else:
        wh, bh = heads
        Hp = wh.shape[1]
        in_arrays += [wh, bh]
        in_specs += [fullspec((Cp, Hp)), fullspec((1, Hp))]
        out_shape = jax.ShapeDtypeStruct((Rp, Hp), jnp.float32)
        out_specs = fullspec((Rp, Hp))
        flops += 2 * Rp * Cp * Hp
        bytes_accessed += Cp * Hp * 2 + Hp * 4 + Rp * Hp * 4
        est_vmem += 2 * (2 * Cp * Hp + 4 * Hp + 4 * Rp * Hp)

    if est_vmem > vlim:
        # TODO(synk): add a row-tiled two-pass (stats then normalize) path for huge activations.
        raise NotImplementedError("activation does not fit a single VMEM tile")

    kernel = _make_block_kernel(rows_true, Rp, heads is not None)
    return pl.pallas_call(
        kernel,
        out_shape=out_shape,
        grid=(1,),
        in_specs=in_specs,
        out_specs=out_specs,
        compiler_params=pltpu.CompilerParams(
            dimension_semantics=("arbitrary",),
            vmem_limit_bytes=vlim),
        cost_estimate=pl.CostEstimate(flops=flops, transcendentals=Cp,
                                      bytes_accessed=bytes_accessed),
    )(*in_arrays)


# -------------------- channels-last im2col glue (XLA) --------------------

def _im2col3d_channels_last(x, k, s, p):
    """x: (N, D, H, W, C). Returns bf16 patches (N*Do*Ho*Wo, C*k^3); columns ordered
    (C, kd, kh, kw) to match torch Conv3d weight.reshape(Cout, -1)."""
    N, D, H, W, C = x.shape
    xp = jnp.pad(x, ((0, 0), (p, p), (p, p), (p, p), (0, 0)))
    Do = (D + 2 * p - k) // s + 1
    Ho = (H + 2 * p - k) // s + 1
    Wo = (W + 2 * p - k) // s + 1
    cols = []
    for kd in range(k):
        for kh in range(k):
            for kw in range(k):
                cols.append(xp[:,
                               kd:kd + (Do - 1) * s + 1:s,
                               kh:kh + (Ho - 1) * s + 1:s,
                               kw:kw + (Wo - 1) * s + 1:s, :])
    stacked = jnp.stack(cols, axis=-1)                    # (N, Do, Ho, Wo, C, k^3)
    patches = stacked.reshape(N * Do * Ho * Wo, C * k * k * k)
    return patches.astype(jnp.bfloat16), (Do, Ho, Wo)


# -------------------- one-time parameter preparation (hoisted out of forward) --------------------

def prepare_params(params, config, latent):
    """Reshape / transpose / pad all weights once so the jitted forward does no per-call prep."""
    blocks = []
    for blk, (k, s, p) in zip(params["blocks"], config):
        w = blk["w"]
        Cout, Cin = int(w.shape[0]), int(w.shape[1])
        K = Cin * k * k * k
        Kp = _round_up(K, 128)                            # lane-dense contraction dim
        Cp = _round_up(Cout, 128)                         # lane-dense output channels
        w2d = jnp.pad(w.reshape(Cout, K).T.astype(jnp.bfloat16),
                      ((0, Kp - K), (0, Cp - Cout)))
        gamma_p = jnp.pad(blk["gamma"].astype(jnp.float32), (0, Cp - Cout)).reshape(1, Cp)
        beta_p = jnp.pad(blk["beta"].astype(jnp.float32), (0, Cp - Cout)).reshape(1, Cp)
        blocks.append(dict(w2d=w2d, gamma=gamma_p, beta=beta_p))

    Cout_last = int(params["blocks"][-1]["w"].shape[0])
    assert Cout_last == params["fc1_w"].shape[1], "conv stack must flatten to fc in_features"
    Cp_last = _round_up(Cout_last, 128)
    Hp = _round_up(2 * latent, 128)
    wc = jnp.concatenate([params["fc1_w"], params["fc2_w"]], axis=0)        # (2L, 100)
    wh = jnp.zeros((Cp_last, Hp), jnp.bfloat16).at[:Cout_last, :2 * latent].set(
        wc.T.astype(jnp.bfloat16))
    bh = jnp.zeros((1, Hp), jnp.float32).at[0, :2 * latent].set(
        jnp.concatenate([params["fc1_b"], params["fc2_b"]]))

    prepped = {"blocks": blocks, "wh": wh, "bh": bh}
    meta = {"config": tuple(config),
            "couts": tuple(int(b["w"].shape[0]) for b in params["blocks"]),
            "latent": int(latent)}
    return prepped, meta


# -------------------- forward --------------------

def encoder_forward(x_ncdhw, prepped, *, meta):
    """Matches Encoder.forward: conv stack -> flatten -> (mu, log_sigma)."""
    config, couts, latent = meta["config"], meta["couts"], meta["latent"]
    N = x_ncdhw.shape[0]
    x = jnp.transpose(x_ncdhw, (0, 2, 3, 4, 1))           # NCDHW -> NDHWC (once)

    blocks = prepped["blocks"]
    n_blocks = len(blocks)
    for bi in range(n_blocks):
        k, s, p = config[bi]
        blk = blocks[bi]
        Cout = couts[bi]

        patches, (Do, Ho, Wo) = _im2col3d_channels_last(x, k, s, p)
        rows, K = patches.shape
        Kp = blk["w2d"].shape[0]
        Rp = _round_up(rows, 8)
        patches = jnp.pad(patches, ((0, Rp - rows), (0, Kp - K)))   # zero rows/cols are harmless

        if bi == n_blocks - 1:
            assert Do == Ho == Wo == 1, "fc-head fusion assumes last conv collapses spatial dims"
            out = _fused_block_call(patches, blk["w2d"], blk["gamma"], blk["beta"], rows,
                                    heads=(prepped["wh"], prepped["bh"]))
            mu = out[:N, :latent]
            log_sigma = out[:N, latent:2 * latent]
            return mu, log_sigma

        act = _fused_block_call(patches, blk["w2d"], blk["gamma"], blk["beta"], rows)
        x = act[:rows, :Cout].reshape(N, Do, Ho, Wo, Cout)   # stay channels-last, bf16


# -------------------- params --------------------

def init_params(key, latent_size, channel_sizes, kernel_sizes):
    """Deterministic synthetic init (shapes match the PyTorch module)."""
    params = {"blocks": []}
    in_ch = 1
    for i, out_ch in enumerate(channel_sizes):
        k = kernel_sizes[i]
        key, kw_, kb_ = jax.random.split(key, 3)
        fan_in = in_ch * k * k * k
        bound = 1.0 / math.sqrt(fan_in)
        params["blocks"].append(dict(
            w=jax.random.uniform(kw_, (out_ch, in_ch, k, k, k), jnp.float32, -bound, bound),
            b=jax.random.uniform(kb_, (out_ch,), jnp.float32, -bound, bound),  # cancelled by BN
            gamma=jnp.ones((out_ch,), jnp.float32),    # BatchNorm3d default weight
            beta=jnp.zeros((out_ch,), jnp.float32),    # BatchNorm3d default bias
        ))
        in_ch = out_ch
    key, k1, k2, k3, k4 = jax.random.split(key, 5)
    bound = 1.0 / math.sqrt(100.0)
    params["fc1_w"] = jax.random.uniform(k1, (latent_size, 100), jnp.float32, -bound, bound)
    params["fc1_b"] = jax.random.uniform(k2, (latent_size,), jnp.float32, -bound, bound)
    params["fc2_w"] = jax.random.uniform(k3, (latent_size, 100), jnp.float32, -bound, bound)
    params["fc2_b"] = jax.random.uniform(k4, (latent_size,), jnp.float32, -bound, bound)
    return params


if __name__ == "__main__":
    # Config whose conv stack flattens to exactly 100 features (fc in_features=100):
    #   input (2, 1, 8, 8, 8)
    #   block1: Conv3d(1 -> 4,   k=3, s=2, p=1) -> (2, 4, 4, 4, 4)
    #   block2: Conv3d(4 -> 100, k=4, s=1, p=0) -> (2, 100, 1, 1, 1) -> flatten (2, 100)
    latent_size = 16
    channel_sizes = [4, 100]
    kernel_sizes = [3, 4]
    stride_sizes = [2, 1]
    padding_sizes = [1, 0]
    config = list(zip(kernel_sizes, stride_sizes, padding_sizes))

    key = jax.random.PRNGKey(0)
    key, kx = jax.random.split(key)
    x = jax.random.normal(kx, (2, 1, 8, 8, 8), dtype=jnp.float32)

    params = init_params(key, latent_size, channel_sizes, kernel_sizes)
    prepped, meta = prepare_params(params, config, latent_size)   # one-time prep (outside jit)

    fwd = jax.jit(functools.partial(encoder_forward, meta=meta))
    mu, log_sigma = fwd(x, prepped)
    jax.block_until_ready((mu, log_sigma))

    assert mu.shape == (2, latent_size) and log_sigma.shape == (2, latent_size)
    assert bool(jnp.isfinite(mu).all()) and bool(jnp.isfinite(log_sigma).all())
    print("KERNEL_OK")
</pallas_src>

<mosaic_0001>
module attributes {stable_mosaic.version = 11 : i64} {
  func.func @kernel(%arg0: i32, %arg1: memref<128x128xbf16, #tpu.memory_space<vmem>>, %arg2: memref<128x128xbf16, #tpu.memory_space<vmem>>, %arg3: memref<1x128xf32, #tpu.memory_space<vmem>>, %arg4: memref<1x128xf32, #tpu.memory_space<vmem>>, %arg5: memref<128x128xbf16, #tpu.memory_space<vmem>>) attributes {dimension_semantics = [#tpu.dimension_semantics<arbitrary>], iteration_bounds = array<i64: 1>, scalar_prefetch = 0 : i64, scratch_operands = 0 : i64, tpu.core_type = #tpu.core_type<tc>, window_params = [{pipeline_mode = #tpu.pipeline_mode<synchronous>, transform_indices = @transform_0, window_bounds = array<i64: 128, 128>}, {pipeline_mode = #tpu.pipeline_mode<synchronous>, transform_indices = @transform_1, window_bounds = array<i64: 128, 128>}, {pipeline_mode = #tpu.pipeline_mode<synchronous>, transform_indices = @transform_2, window_bounds = array<i64: 1, 128>}, {pipeline_mode = #tpu.pipeline_mode<synchronous>, transform_indices = @transform_3, window_bounds = array<i64: 1, 128>}, {pipeline_mode = #tpu.pipeline_mode<synchronous>, transform_indices = @transform_4, window_bounds = array<i64: 128, 128>}]} {
    %c0 = arith.constant 0 : index
    %c0_0 = arith.constant 0 : index
    %0 = vector.load %arg1[%c0, %c0_0] : memref<128x128xbf16, #tpu.memory_space<vmem>>, vector<128x128xbf16>
    %c0_1 = arith.constant 0 : index
    %c0_2 = arith.constant 0 : index
    %1 = vector.load %arg2[%c0_1, %c0_2] : memref<128x128xbf16, #tpu.memory_space<vmem>>, vector<128x128xbf16>
    %cst = arith.constant dense<0.000000e+00> : vector<128x128xf32>
    %2 = tpu.matmul %0, %1, %cst {dimension_numbers = #tpu.dot_dimension_numbers<[1], [0], [0], [1], [0, 0, 1, 1], [], []>} : vector<128x128xbf16>, vector<128x128xbf16>, vector<128x128xf32> -> vector<128x128xf32>
    %c0_3 = arith.constant 0 : index
    %c0_4 = arith.constant 0 : index
    %3 = vector.load %arg3[%c0_3, %c0_4] : memref<1x128xf32, #tpu.memory_space<vmem>>, vector<1x128xf32>
    %c0_5 = arith.constant 0 : index
    %c0_6 = arith.constant 0 : index
    %4 = vector.load %arg4[%c0_5, %c0_6] : memref<1x128xf32, #tpu.memory_space<vmem>>, vector<1x128xf32>
    %cst_7 = arith.constant dense<0.000000e+00> : vector<128xf32>
    %5 = vector.multi_reduction <add>, %2, %cst_7 [0] : vector<128x128xf32> to vector<128xf32>
    %6 = vector.shape_cast %5 : vector<128xf32> to vector<1x128xf32>
    %cst_8 = arith.constant 7.812500e-03 : f32
    %7 = vector.broadcast %cst_8 : f32 to vector<1x128xf32>
    %8 = arith.mulf %6, %7 : vector<1x128xf32>
    %9 = vector.broadcast %8 : vector<1x128xf32> to vector<128x128xf32>
    %10 = arith.subf %2, %9 : vector<128x128xf32>
    %11 = arith.mulf %10, %10 : vector<128x128xf32>
    %cst_9 = arith.constant dense<0.000000e+00> : vector<128xf32>
    %12 = vector.multi_reduction <add>, %11, %cst_9 [0] : vector<128x128xf32> to vector<128xf32>
    %13 = vector.shape_cast %12 : vector<128xf32> to vector<1x128xf32>
    %cst_10 = arith.constant 7.812500e-03 : f32
    %14 = vector.broadcast %cst_10 : f32 to vector<1x128xf32>
    %15 = arith.mulf %13, %14 : vector<1x128xf32>
    %cst_11 = arith.constant 9.99999974E-6 : f32
    %16 = vector.broadcast %cst_11 : f32 to vector<1x128xf32>
    %17 = arith.addf %15, %16 : vector<1x128xf32>
    %18 = math.rsqrt %17 : vector<1x128xf32>
    %19 = arith.mulf %3, %18 : vector<1x128xf32>
    %20 = arith.mulf %8, %19 : vector<1x128xf32>
    %21 = arith.subf %4, %20 : vector<1x128xf32>
    %22 = vector.broadcast %19 : vector<1x128xf32> to vector<128x128xf32>
    %23 = arith.mulf %2, %22 : vector<128x128xf32>
    %24 = vector.broadcast %21 : vector<1x128xf32> to vector<128x128xf32>
    %25 = arith.addf %23, %24 : vector<128x128xf32>
    %cst_12 = arith.constant 0.000000e+00 : f32
    %26 = vector.broadcast %cst_12 : f32 to vector<128x128xf32>
    %27 = arith.maximumf %25, %26 : vector<128x128xf32>
    %28 = arith.truncf %27 : vector<128x128xf32> to vector<128x128xbf16>
    %c0_13 = arith.constant 0 : index
    %c0_14 = arith.constant 0 : index
    %29 = vector.load %arg5[%c0_13, %c0_14] : memref<128x128xbf16, #tpu.memory_space<vmem>>, vector<128x128xbf16>
    tpu.vector_store %arg5[%c0_13, %c0_14], %28 {strides = array<i32>} : memref<128x128xbf16, #tpu.memory_space<vmem>>, vector<128x128xbf16>,
    return
  }
  func.func @transform_0(%arg0: i32) -> (i32, i32) {
    %c0_i32 = arith.constant 0 : i32
    %c0_i32_0 = arith.constant 0 : i32
    %c0_i32_1 = arith.constant 0 : i32
    return %c0_i32, %c0_i32_0 : i32, i32
  }
  func.func @transform_1(%arg0: i32) -> (i32, i32) {
    %c0_i32 = arith.constant 0 : i32
    %c0_i32_0 = arith.constant 0 : i32
    %c0_i32_1 = arith.constant 0 : i32
    return %c0_i32, %c0_i32_0 : i32, i32
  }
  func.func @transform_2(%arg0: i32) -> (i32, i32) {
    %c0_i32 = arith.constant 0 : i32
    %c0_i32_0 = arith.constant 0 : i32
    %c0_i32_1 = arith.constant 0 : i32
    return %c0_i32, %c0_i32_0 : i32, i32
  }
  func.func @transform_3(%arg0: i32) -> (i32, i32) {
    %c0_i32 = arith.constant 0 : i32
    %c0_i32_0 = arith.constant 0 : i32
    %c0_i32_1 = arith.constant 0 : i32
    return %c0_i32, %c0_i32_0 : i32, i32
  }
  func.func @transform_4(%arg0: i32) -> (i32, i32) {
    %c0_i32 = arith.constant 0 : i32
    %c0_i32_0 = arith.constant 0 : i32
    %c0_i32_1 = arith.constant 0 : i32
    return %c0_i32, %c0_i32_0 : i32, i32
  }
}

module attributes {stable_mosaic.version = 11 : i64} {
  func.func @kernel(%arg0: i32, %arg1: memref<8x256xbf16, #tpu.memory_space<vmem>>, %arg2: memref<256x128xbf16, #tpu.memory_space<vmem>>, %arg3: memref<1x128xf32, #tpu.memory_space<vmem>>, %arg4: memref<1x128xf32, #tpu.memory_space<vmem>>, %arg5: memref<128x128xbf16, #tpu.memory_space<vmem>>, %arg6: memref<1x128xf32, #tpu.memory_space<vmem>>, %arg7: memref<8x128xf32, #tpu.memory_space<vmem>>) attributes {dimension_semantics = [#tpu.dimension_semantics<arbitrary>], iteration_bounds = array<i64: 1>, scalar_prefetch = 0 : i64, scratch_operands = 0 : i64, tpu.core_type = #tpu.core_type<tc>, window_params = [{pipeline_mode = #tpu.pipeline_mode<synchronous>, transform_indices = @transform_0, window_bounds = array<i64: 8, 256>}, {pipeline_mode = #tpu.pipeline_mode<synchronous>, transform_indices = @transform_1, window_bounds = array<i64: 256, 128>}, {pipeline_mode = #tpu.pipeline_mode<synchronous>, transform_indices = @transform_2, window_bounds = array<i64: 1, 128>}, {pipeline_mode = #tpu.pipeline_mode<synchronous>, transform_indices = @transform_3, window_bounds = array<i64: 1, 128>}, {pipeline_mode = #tpu.pipeline_mode<synchronous>, transform_indices = @transform_4, window_bounds = array<i64: 128, 128>}, {pipeline_mode = #tpu.pipeline_mode<synchronous>, transform_indices = @transform_5, window_bounds = array<i64: 1, 128>}, {pipeline_mode = #tpu.pipeline_mode<synchronous>, transform_indices = @transform_6, window_bounds = array<i64: 8, 128>}]} {
    %c0 = arith.constant 0 : index
    %c0_0 = arith.constant 0 : index
    %0 = vector.load %arg1[%c0, %c0_0] : memref<8x256xbf16, #tpu.memory_space<vmem>>, vector<8x256xbf16>
    %c0_1 = arith.constant 0 : index
    %c0_2 = arith.constant 0 : index
    %1 = vector.load %arg2[%c0_1, %c0_2] : memref<256x128xbf16, #tpu.memory_space<vmem>>, vector<256x128xbf16>
    %cst = arith.constant dense<0.000000e+00> : vector<8x128xf32>
    %2 = tpu.matmul %0, %1, %cst {dimension_numbers = #tpu.dot_dimension_numbers<[1], [0], [0], [1], [0, 0, 1, 1], [], []>} : vector<8x256xbf16>, vector<256x128xbf16>, vector<8x128xf32> -> vector<8x128xf32>
    %c0_3 = arith.constant 0 : index
    %c0_4 = arith.constant 0 : index
    %3 = vector.load %arg3[%c0_3, %c0_4] : memref<1x128xf32, #tpu.memory_space<vmem>>, vector<1x128xf32>
    %c0_5 = arith.constant 0 : index
    %c0_6 = arith.constant 0 : index
    %4 = vector.load %arg4[%c0_5, %c0_6] : memref<1x128xf32, #tpu.memory_space<vmem>>, vector<1x128xf32>
    %cst_7 = arith.constant dense<0.000000e+00> : vector<128xf32>
    %5 = vector.multi_reduction <add>, %2, %cst_7 [0] : vector<8x128xf32> to vector<128xf32>
    %6 = vector.shape_cast %5 : vector<128xf32> to vector<1x128xf32>
    %cst_8 = arith.constant 5.000000e-01 : f32
    %7 = vector.broadcast %cst_8 : f32 to vector<1x128xf32>
    %8 = arith.mulf %6, %7 : vector<1x128xf32>
    %9 = vector.broadcast %8 : vector<1x128xf32> to vector<8x128xf32>
    %10 = arith.subf %2, %9 : vector<8x128xf32>
    %11 = tpu.iota {dimensions = array<i32: 0>} : vector<8x128xi32>
    %c2_i32 = arith.constant 2 : i32
    %12 = vector.broadcast %c2_i32 : i32 to vector<8x128xi32>
    %13 = arith.cmpi slt, %11, %12 : vector<8x128xi32>
    %cst_9 = arith.constant 0.000000e+00 : f32
    %14 = vector.broadcast %cst_9 : f32 to vector<8x128xf32>
    %15 = arith.select %13, %10, %14 : vector<8x128xi1>, vector<8x128xf32>
    %16 = arith.mulf %15, %15 : vector<8x128xf32>
    %cst_10 = arith.constant dense<0.000000e+00> : vector<128xf32>
    %17 = vector.multi_reduction <add>, %16, %cst_10 [0] : vector<8x128xf32> to vector<128xf32>
    %18 = vector.shape_cast %17 : vector<128xf32> to vector<1x128xf32>
    %cst_11 = arith.constant 5.000000e-01 : f32
    %19 = vector.broadcast %cst_11 : f32 to vector<1x128xf32>
    %20 = arith.mulf %18, %19 : vector<1x128xf32>
    %cst_12 = arith.constant 9.99999974E-6 : f32
    %21 = vector.broadcast %cst_12 : f32 to vector<1x128xf32>
    %22 = arith.addf %20, %21 : vector<1x128xf32>
    %23 = math.rsqrt %22 : vector<1x128xf32>
    %24 = arith.mulf %3, %23 : vector<1x128xf32>
    %25 = arith.mulf %8, %24 : vector<1x128xf32>
    %26 = arith.subf %4, %25 : vector<1x128xf32>
    %27 = vector.broadcast %24 : vector<1x128xf32> to vector<8x128xf32>
    %28 = arith.mulf %2, %27 : vector<8x128xf32>
    %29 = vector.broadcast %26 : vector<1x128xf32> to vector<8x128xf32>
    %30 = arith.addf %28, %29 : vector<8x128xf32>
    %cst_13 = arith.constant 0.000000e+00 : f32
    %31 = vector.broadcast %cst_13 : f32 to vector<8x128xf32>
    %32 = arith.maximumf %30, %31 : vector<8x128xf32>
    %33 = arith.truncf %32 : vector<8x128xf32> to vector<8x128xbf16>
    %c0_14 = arith.constant 0 : index
    %c0_15 = arith.constant 0 : index
    %34 = vector.load %arg5[%c0_14, %c0_15] : memref<128x128xbf16, #tpu.memory_space<vmem>>, vector<128x128xbf16>
    %cst_16 = arith.constant dense<0.000000e+00> : vector<8x128xf32>
    %35 = tpu.matmul %33, %34, %cst_16 {dimension_numbers = #tpu.dot_dimension_numbers<[1], [0], [0], [1], [0, 0, 1, 1], [], []>} : vector<8x128xbf16>, vector<128x128xbf16>, vector<8x128xf32> -> vector<8x128xf32>
    %c0_17 = arith.constant 0 : index
    %c0_18 = arith.constant 0 : index
    %36 = vector.load %arg6[%c0_17, %c0_18] : memref<1x128xf32, #tpu.memory_space<vmem>>, vector<1x128xf32>
    %37 = vector.broadcast %36 : vector<1x128xf32> to vector<8x128xf32>
    %38 = arith.addf %35, %37 : vector<8x128xf32>
    %c0_19 = arith.constant 0 : index
    %c0_20 = arith.constant 0 : index
    %39 = vector.load %arg7[%c0_19, %c0_20] : memref<8x128xf32, #tpu.memory_space<vmem>>, vector<8x128xf32>
    tpu.vector_store %arg7[%c0_19, %c0_20], %38 {strides = array<i32>} : memref<8x128xf32, #tpu.memory_space<vmem>>, vector<8x128xf32>,
    return
  }
  func.func @transform_0(%arg0: i32) -> (i32, i32) {
    %c0_i32 = arith.constant 0 : i32
    %c0_i32_0 = arith.constant 0 : i32
    %c0_i32_1 = arith.constant 0 : i32
    return %c0_i32, %c0_i32_0 : i32, i32
  }
  func.func @transform_1(%arg0: i32) -> (i32, i32) {
    %c0_i32 = arith.constant 0 : i32
    %c0_i32_0 = arith.constant 0 : i32
    %c0_i32_1 = arith.constant 0 : i32
    return %c0_i32, %c0_i32_0 : i32, i32
  }
  func.func @transform_2(%arg0: i32) -> (i32, i32) {
    %c0_i32 = arith.constant 0 : i32
    %c0_i32_0 = arith.constant 0 : i32
    %c0_i32_1 = arith.constant 0 : i32
    return %c0_i32, %c0_i32_0 : i32, i32
  }
  func.func @transform_3(%arg0: i32) -> (i32, i32) {
    %c0_i32 = arith.constant 0 : i32
    %c0_i32_0 = arith.constant 0 : i32
    %c0_i32_1 = arith.constant 0 : i32
    return %c0_i32, %c0_i32_0 : i32, i32
  }
  func.func @transform_4(%arg0: i32) -> (i32, i32) {
    %c0_i32 = arith.constant 0 : i32
    %c0_i32_0 = arith.constant 0 : i32
    %c0_i32_1 = arith.constant 0 : i32
    return %c0_i32, %c0_i32_0 : i32, i32
  }
  func.func @transform_5(%arg0: i32) -> (i32, i32) {
    %c0_i32 = arith.constant 0 : i32
    %c0_i32_0 = arith.constant 0 : i32
    %c0_i32_1 = arith.constant 0 : i32
    return %c0_i32, %c0_i32_0 : i32, i32
  }
  func.func @transform_6(%arg0: i32) -> (i32, i32) {
    %c0_i32 = arith.constant 0 : i32
    %c0_i32_0 = arith.constant 0 : i32
    %c0_i32_1 = arith.constant 0 : i32
    return %c0_i32, %c0_i32_0 : i32, i32
  }
}

</mosaic_0001>

<llo_original>
// kernel: encoder_forward.2
$region0: #{encoder_forward.2}
  #allocation0 [shape = 'u32[]', space=smem, size = 0x4, offset = 0x4, fixed_abs, tag = 'smem constant byte address 0x4 - core index']
  #allocation1 [shape = 'u32[72,128]{1,0:T(1,128)}', space=vmem, size = 0x9000, scoped, tag = 'internal scratch']
  %s0 = inlined_call_operand.vmem [shape: bf16[128,128], index: 0, kind: input, shape index: {}]
  %s1 = inlined_call_operand.vmem [shape: bf16[128,128], index: 1, kind: input, shape index: {}]
  %s2 = inlined_call_operand.vmem [shape: f32[1,128], index: 2, kind: input, shape index: {}]
  %s3 = inlined_call_operand.vmem [shape: f32[1,128], index: 3, kind: input, shape index: {}]
  %s4 = inlined_call_operand.vmem [shape: bf16[128,128], index: 4, kind: output, shape index: {}]
  %s5 = sld [smem:[#allocation0]]
  $region26: #{encoder_forward.2} parent=0
    _
  %s7 = ssub.s32 1, %s5
  %s8 = scalar_select 0, %s7, %s5
  // Predicated region
  $region2: #{encoder_forward.2} parent=0 // pred_check
    _
  $region3: #{encoder_forward.2} parent=0 // pred_check_branch
    %10 = sbr.rel (0) target = $region5
  $region4: #{encoder_forward.2} parent=0 // pred_region
    _
  $region5: #{encoder_forward.2} parent=0 // pred_fallthru
    _
  // Predicated region
  $region6: #{encoder_forward.2} parent=0 // pred_check
    _
  $region7: #{encoder_forward.2} parent=0 // pred_check_branch
    %12 = sbr.rel (0) target = $region9
  $region8: #{encoder_forward.2} parent=0 // pred_region
    _
  $region9: #{encoder_forward.2} parent=0 // pred_fallthru
    _
  // Predicated region
  $region10: #{encoder_forward.2} parent=0 // pred_check
    _
  $region11: #{encoder_forward.2} parent=0 // pred_check_branch
    %14 = sbr.rel (0) target = $region13
  $region12: #{encoder_forward.2} parent=0 // pred_region
    _
  $region13: #{encoder_forward.2} parent=0 // pred_fallthru
    _
  // Predicated region
  $region14: #{encoder_forward.2} parent=0 // pred_check
    _
  $region15: #{encoder_forward.2} parent=0 // pred_check_branch
    %16 = sbr.rel (0) target = $region17
  $region16: #{encoder_forward.2} parent=0 // pred_region
    _
  $region17: #{encoder_forward.2} parent=0 // pred_fallthru
    _
  %v17 = vld [vmem:[%s0] sm:$0xf]
  %v18 = vld [vmem:[%s0 + $0x4] sm:$0xf]
  %v19 = vld [vmem:[%s0 + $0x8] sm:$0xf]
  %v20 = vld [vmem:[%s0 + $0xc] sm:$0xf]
  %v21 = vld [vmem:[%s0 + $0x10] sm:$0xf]
  %v22 = vld [vmem:[%s0 + $0x14] sm:$0xf]
  %v23 = vld [vmem:[%s0 + $0x18] sm:$0xf]
  %v24 = vld [vmem:[%s0 + $0x1c] sm:$0xf]
  %v25 = vld [vmem:[%s0 + $0x20] sm:$0xf]
  %v26 = vld [vmem:[%s0 + $0x24] sm:$0xf]
  %v27 = vld [vmem:[%s0 + $0x28] sm:$0xf]
  %v28 = vld [vmem:[%s0 + $0x2c] sm:$0xf]
  %v29 = vld [vmem:[%s0 + $0x30] sm:$0xf]
  %v30 = vld [vmem:[%s0 + $0x34] sm:$0xf]
  %v31 = vld [vmem:[%s0 + $0x38] sm:$0xf]
  %v32 = vld [vmem:[%s0 + $0x3c] sm:$0xf]
  %v33 = vld [vmem:[%s1] sm:$0xf]
  %v34 = vld [vmem:[%s1 + $0x4] sm:$0xf]
  %v35 = vld [vmem:[%s1 + $0x8] sm:$0xf]
  %v36 = vld [vmem:[%s1 + $0xc] sm:$0xf]
  %v37 = vld [vmem:[%s1 + $0x10] sm:$0xf]
  %v38 = vld [vmem:[%s1 + $0x14] sm:$0xf]
  %v39 = vld [vmem:[%s1 + $0x18] sm:$0xf]
  %v40 = vld [vmem:[%s1 + $0x1c] sm:$0xf]
  %v41 = vld [vmem:[%s1 + $0x20] sm:$0xf]
  %v42 = vld [vmem:[%s1 + $0x24] sm:$0xf]
  %v43 = vld [vmem:[%s1 + $0x28] sm:$0xf]
  %v44 = vld [vmem:[%s1 + $0x2c] sm:$0xf]
  %v45 = vld [vmem:[%s1 + $0x30] sm:$0xf]
  %v46 = vld [vmem:[%s1 + $0x34] sm:$0xf]
  %v47 = vld [vmem:[%s1 + $0x38] sm:$0xf]
  %v48 = vld [vmem:[%s1 + $0x3c] sm:$0xf]
  %v65 = vunpack.c.l.b16 %v17
  %v66 = vunpack.c.l.b16 %v18
  %v67 = vunpack.c.l.b16 %v19
  %v68 = vunpack.c.l.b16 %v20
  %v69 = vunpack.c.l.b16 %v21
  %v70 = vunpack.c.l.b16 %v22
  %v71 = vunpack.c.l.b16 %v23
  %v72 = vunpack.c.l.b16 %v24
  %v73 = vunpack.c.l.b16 %v25
  %v74 = vunpack.c.l.b16 %v26
  %v75 = vunpack.c.l.b16 %v27
  %v76 = vunpack.c.l.b16 %v28
  %v77 = vunpack.c.l.b16 %v29
  %v78 = vunpack.c.l.b16 %v30
  %v79 = vunpack.c.l.b16 %v31
  %v80 = vunpack.c.l.b16 %v32
  %v81 = vpack.c.b16 %v66, %v65
  %v82 = vpack.c.b16 %v68, %v67
  %v83 = vpack.c.b16 %v70, %v69
  %v84 = vpack.c.b16 %v72, %v71
  %v85 = vpack.c.b16 %v74, %v73
  %v86 = vpack.c.b16 %v76, %v75
  %v87 = vpack.c.b16 %v78, %v77
  %v88 = vpack.c.b16 %v80, %v79
  %v113 = vunpack.c.l.b16 %v33
  %v114 = vunpack.c.l.b16 %v34
  %v115 = vunpack.c.l.b16 %v35
  %v116 = vunpack.c.l.b16 %v36
  %v117 = vunpack.c.l.b16 %v37
  %v118 = vunpack.c.l.b16 %v38
  %v119 = vunpack.c.l.b16 %v39
  %v120 = vunpack.c.l.b16 %v40
  %v121 = vunpack.c.l.b16 %v41
  %v122 = vunpack.c.l.b16 %v42
  %v123 = vunpack.c.l.b16 %v43
  %v124 = vunpack.c.l.b16 %v44
  %v125 = vunpack.c.l.b16 %v45
  %v126 = vunpack.c.l.b16 %v46
  %v127 = vunpack.c.l.b16 %v47
  %v128 = vunpack.c.l.b16 %v48
  %v129 = vpack.c.b16 %v114, %v113
  %v130 = vpack.c.b16 %v116, %v115
  %v131 = vpack.c.b16 %v118, %v117
  %v132 = vpack.c.b16 %v120, %v119
  %v133 = vpack.c.b16 %v122, %v121
  %v134 = vpack.c.b16 %v124, %v123
  %v135 = vpack.c.b16 %v126, %v125
  %v136 = vpack.c.b16 %v128, %v127
  %145 = vmatpush.bf16.msra.mxu0 %v136
  %146 = vmatpush.bf16.msra.mxu0 %v135
  %147 = vmatpush.bf16.msra.mxu0 %v134
  %148 = vmatpush.bf16.msra.mxu0 %v133
  %149 = vmatpush.bf16.msra.mxu0 %v132
  %150 = vmatpush.bf16.msra.mxu0 %v131
  %151 = vmatpush.bf16.msra.mxu0 %v130
  %152 = vmatpush.bf16.msra.mxu0 %v129
  %153 = vmatmul.bf16.gmra.mxu0 %v81
  %v154 = vpop.f32.mrf.mxu0
  %v155 = vadd.f32 0.0, %v154
  %v156 = vpop.f32.mrf.mxu0
  %v157 = vadd.f32 0.0, %v156
  %158 = vmatmul.bf16.gmra.mxu0 %v82
  %v159 = vpop.f32.mrf.mxu0
  %v160 = vadd.f32 0.0, %v159
  %v161 = vpop.f32.mrf.mxu0
  %v162 = vadd.f32 0.0, %v161
  %163 = vmatmul.bf16.gmra.mxu0 %v83
  %v164 = vpop.f32.mrf.mxu0
  %v165 = vadd.f32 0.0, %v164
  %v166 = vpop.f32.mrf.mxu0
  %v167 = vadd.f32 0.0, %v166
  %168 = vmatmul.bf16.gmra.mxu0 %v84
  %v169 = vpop.f32.mrf.mxu0
  %v170 = vadd.f32 0.0, %v169
  %v171 = vpop.f32.mrf.mxu0
  %v172 = vadd.f32 0.0, %v171
  %173 = vmatmul.bf16.gmra.mxu0 %v85
  %v174 = vpop.f32.mrf.mxu0
  %v175 = vadd.f32 0.0, %v174
  %v176 = vpop.f32.mrf.mxu0
  %v177 = vadd.f32 0.0, %v176
  %178 = vmatmul.bf16.gmra.mxu0 %v86
  %v179 = vpop.f32.mrf.mxu0
  %v180 = vadd.f32 0.0, %v179
  %v181 = vpop.f32.mrf.mxu0
  %v182 = vadd.f32 0.0, %v181
  %183 = vmatmul.bf16.gmra.mxu0 %v87
  %v184 = vpop.f32.mrf.mxu0
  %v185 = vadd.f32 0.0, %v184
  %v186 = vpop.f32.mrf.mxu0
  %v187 = vadd.f32 0.0, %v186
  %188 = vmatmul.bf16.gmra.mxu0 %v88
  %v189 = vpop.f32.mrf.mxu0
  %v190 = vadd.f32 0.0, %v189
  %v191 = vpop.f32.mrf.mxu0
  %v192 = vadd.f32 0.0, %v191
  %193 = vdwg.mxu0
  %v194 = vld [vmem:[%s2] sm:$0x1]
  %v195 = vld [vmem:[%s3] sm:$0x1]
  %v196 = vadd.f32 %v155, %v157
  %v197 = vadd.f32 %v196, %v160
  %v198 = vadd.f32 %v197, %v162
  %v199 = vadd.f32 %v198, %v165
  %v200 = vadd.f32 %v199, %v167
  %v201 = vadd.f32 %v200, %v170
  %v202 = vadd.f32 %v201, %v172
  %v203 = vadd.f32 %v202, %v175
  %v204 = vadd.f32 %v203, %v177
  %v205 = vadd.f32 %v204, %v180
  %v206 = vadd.f32 %v205, %v182
  %v207 = vadd.f32 %v206, %v185
  %v208 = vadd.f32 %v207, %v187
  %v209 = vadd.f32 %v208, %v190
  %v210 = vadd.f32 %v209, %v192
  %v211 = vrot.slane %v210, 4
  %v212 = vadd.f32 %v210, %v211
  %v213 = vrot.slane %v212, 2
  %v214 = vadd.f32 %v212, %v213
  %v215 = vrot.slane %v214, 1
  %v216 = vadd.f32 %v214, %v215
  %v217 = vmul.f32 %v216, 0.0078125
  %v218 = vsub.f32 %v155, %v217
  %v219 = vsub.f32 %v157, %v217
  %v220 = vsub.f32 %v160, %v217
  %v221 = vsub.f32 %v162, %v217
  %v222 = vsub.f32 %v165, %v217
  %v223 = vsub.f32 %v167, %v217
  %v224 = vsub.f32 %v170, %v217
  %v225 = vsub.f32 %v172, %v217
  %v226 = vsub.f32 %v175, %v217
  %v227 = vsub.f32 %v177, %v217
  %v228 = vsub.f32 %v180, %v217
  %v229 = vsub.f32 %v182, %v217
  %v230 = vsub.f32 %v185, %v217
  %v231 = vsub.f32 %v187, %v217
  %v232 = vsub.f32 %v190, %v217
  %v233 = vsub.f32 %v192, %v217
  %v234 = vmul.f32 %v218, %v218
  %v235 = vmul.f32 %v219, %v219
  %v236 = vmul.f32 %v220, %v220
  %v237 = vmul.f32 %v221, %v221
  %v238 = vmul.f32 %v222, %v222
  %v239 = vmul.f32 %v223, %v223
  %v240 = vmul.f32 %v224, %v224
  %v241 = vmul.f32 %v225, %v225
  %v242 = vmul.f32 %v226, %v226
  %v243 = vmul.f32 %v227, %v227
  %v244 = vmul.f32 %v228, %v228
  %v245 = vmul.f32 %v229, %v229
  %v246 = vmul.f32 %v230, %v230
  %v247 = vmul.f32 %v231, %v231
  %v248 = vmul.f32 %v232, %v232
  %v249 = vmul.f32 %v233, %v233
  %v250 = vadd.f32 %v234, %v235
  %v251 = vadd.f32 %v250, %v236
  %v252 = vadd.f32 %v251, %v237
  %v253 = vadd.f32 %v252, %v238
  %v254 = vadd.f32 %v253, %v239
  %v255 = vadd.f32 %v254, %v240
  %v256 = vadd.f32 %v255, %v241
  %v257 = vadd.f32 %v256, %v242
  %v258 = vadd.f32 %v257, %v243
  %v259 = vadd.f32 %v258, %v244
  %v260 = vadd.f32 %v259, %v245
  %v261 = vadd.f32 %v260, %v246
  %v262 = vadd.f32 %v261, %v247
  %v263 = vadd.f32 %v262, %v248
  %v264 = vadd.f32 %v263, %v249
  %v265 = vrot.slane %v264, 4
  %v266 = vadd.f32 %v264, %v265
  %v267 = vrot.slane %v266, 2
  %v268 = vadd.f32 %v266, %v267
  %v269 = vrot.slane %v268, 1
  %v270 = vadd.f32 %v268, %v269
  %v271 = vmul.f32 %v270, 0.0078125
  %v272 = vadd.f32 %v271, 1e-05
  %v273 = vrsqrt.pop %v272
  %v274 = vmul.f32 %v273, %v272
  %v275 = vmul.f32 %v274, %v273
  %v276 = vmul.f32 0.5, %v275
  %v277 = vsub.f32 1.5, %v276
  %v278 = vmul.f32 %v273, %v277
  %vm279 = vweird.f32 %v272
  %vm280 = vweird.f32 %v273
  %vm281 = vmor %vm279, %vm280
  %v282 = vsel %vm281, %v273, %v278
  %v283 = vmul.f32 %v194, %v282
  %v284 = vmul.f32 %v217, %v283
  %v285 = vsub.f32 %v195, %v284
  %v287 = vperm.slane %v283, 0
  %v289 = vmul.f32 %v155, %v287
  %v290 = vmul.f32 %v157, %v287
  %v291 = vmul.f32 %v160, %v287
  %v292 = vmul.f32 %v162, %v287
  %v293 = vmul.f32 %v165, %v287
  %v294 = vmul.f32 %v167, %v287
  %v295 = vmul.f32 %v170, %v287
  %v296 = vmul.f32 %v172, %v287
  %v297 = vmul.f32 %v175, %v287
  %v298 = vmul.f32 %v177, %v287
  %v299 = vmul.f32 %v180, %v287
  %v300 = vmul.f32 %v182, %v287
  %v301 = vmul.f32 %v185, %v287
  %v302 = vmul.f32 %v187, %v287
  %v303 = vmul.f32 %v190, %v287
  %v304 = vmul.f32 %v192, %v287
  %v306 = vperm.slane %v285, 0
  %v308 = vadd.f32 %v289, %v306
  %v309 = vadd.f32 %v290, %v306
  %v310 = vadd.f32 %v291, %v306
  %v311 = vadd.f32 %v292, %v306
  %v312 = vadd.f32 %v293, %v306
  %v313 = vadd.f32 %v294, %v306
  %v314 = vadd.f32 %v295, %v306
  %v315 = vadd.f32 %v296, %v306
  %v316 = vadd.f32 %v297, %v306
  %v317 = vadd.f32 %v298, %v306
  %v318 = vadd.f32 %v299, %v306
  %v319 = vadd.f32 %v300, %v306
  %v320 = vadd.f32 %v301, %v306
  %v321 = vadd.f32 %v302, %v306
  %v322 = vadd.f32 %v303, %v306
  %v323 = vadd.f32 %v304, %v306
  %v324 = vmax.f32 %v308, 0.0
  %v325 = vmax.f32 %v309, 0.0
  %v326 = vmax.f32 %v310, 0.0
  %v327 = vmax.f32 %v311, 0.0
  %v328 = vmax.f32 %v312, 0.0
  %v329 = vmax.f32 %v313, 0.0
  %v330 = vmax.f32 %v314, 0.0
  %v331 = vmax.f32 %v315, 0.0
  %v332 = vmax.f32 %v316, 0.0
  %v333 = vmax.f32 %v317, 0.0
  %v334 = vmax.f32 %v318, 0.0
  %v335 = vmax.f32 %v319, 0.0
  %v336 = vmax.f32 %v320, 0.0
  %v337 = vmax.f32 %v321, 0.0
  %v338 = vmax.f32 %v322, 0.0
  %v339 = vmax.f32 %v323, 0.0
  %v340 = vpack.c.bf16 %v324, %v324
  %v341 = vpack.c.bf16 %v325, %v325
  %v342 = vpack.c.bf16 %v326, %v326
  %v343 = vpack.c.bf16 %v327, %v327
  %v344 = vpack.c.bf16 %v328, %v328
  %v345 = vpack.c.bf16 %v329, %v329
  %v346 = vpack.c.bf16 %v330, %v330
  %v347 = vpack.c.bf16 %v331, %v331
  %v348 = vpack.c.bf16 %v332, %v332
  %v349 = vpack.c.bf16 %v333, %v333
  %v350 = vpack.c.bf16 %v334, %v334
  %v351 = vpack.c.bf16 %v335, %v335
  %v352 = vpack.c.bf16 %v336, %v336
  %v353 = vpack.c.bf16 %v337, %v337
  %v354 = vpack.c.bf16 %v338, %v338
  %v355 = vpack.c.bf16 %v339, %v339
  %356 = vst [vmem:[%s4] sm:$0xf] %v340
  %357 = vst [vmem:[%s4 + $0x4] sm:$0xf] %v341
  %358 = vst [vmem:[%s4 + $0x8] sm:$0xf] %v342
  %359 = vst [vmem:[%s4 + $0xc] sm:$0xf] %v343
  %360 = vst [vmem:[%s4 + $0x10] sm:$0xf] %v344
  %361 = vst [vmem:[%s4 + $0x14] sm:$0xf] %v345
  %362 = vst [vmem:[%s4 + $0x18] sm:$0xf] %v346
  %363 = vst [vmem:[%s4 + $0x1c] sm:$0xf] %v347
  %364 = vst [vmem:[%s4 + $0x20] sm:$0xf] %v348
  %365 = vst [vmem:[%s4 + $0x24] sm:$0xf] %v349
  %366 = vst [vmem:[%s4 + $0x28] sm:$0xf] %v350
  %367 = vst [vmem:[%s4 + $0x2c] sm:$0xf] %v351
  %368 = vst [vmem:[%s4 + $0x30] sm:$0xf] %v352
  %369 = vst [vmem:[%s4 + $0x34] sm:$0xf] %v353
  %370 = vst [vmem:[%s4 + $0x38] sm:$0xf] %v354
  %371 = vst [vmem:[%s4 + $0x3c] sm:$0xf] %v355
  // Predicated region
  $region18: #{encoder_forward.2} parent=0 // pred_check
    _
  $region19: #{encoder_forward.2} parent=0 // pred_check_branch
    %373 = sbr.rel (0) target = $region21
  $region20: #{encoder_forward.2} parent=0 // pred_region
    _
  $region21: #{encoder_forward.2} parent=0 // pred_fallthru
    _
  // Predicated region
  $region22: #{encoder_forward.2} parent=0 // pred_check
    _
  $region23: #{encoder_forward.2} parent=0 // pred_check_branch
    %375 = sbr.rel (0) target = $region25
  $region24: #{encoder_forward.2} parent=0 // pred_region
    _
  $region25: #{encoder_forward.2} parent=0 // pred_fallthru
    _

// kernel: encoder_forward.3
$region0: #{encoder_forward.3}
  #allocation0 [shape = 'u32[]', space=smem, size = 0x4, offset = 0x4, fixed_abs, tag = 'smem constant byte address 0x4 - core index']
  #allocation1 [shape = 'u32[72,128]{1,0:T(1,128)}', space=vmem, size = 0x9000, scoped, tag = 'internal scratch']
  %s0 = inlined_call_operand.vmem [shape: bf16[8,256], index: 0, kind: input, shape index: {}]
  %s1 = inlined_call_operand.vmem [shape: bf16[256,128], index: 1, kind: input, shape index: {}]
  %s2 = inlined_call_operand.vmem [shape: f32[1,128], index: 2, kind: input, shape index: {}]
  %s3 = inlined_call_operand.vmem [shape: f32[1,128], index: 3, kind: input, shape index: {}]
  %s4 = inlined_call_operand.vmem [shape: bf16[128,128], index: 4, kind: input, shape index: {}]
  %s5 = inlined_call_operand.vmem [shape: f32[1,128], index: 5, kind: input, shape index: {}]
  %s6 = inlined_call_operand.vmem [shape: f32[8,128], index: 6, kind: output, shape index: {}]
  %s7 = sld [smem:[#allocation0]]
  $region34: #{encoder_forward.3} parent=0
    _
  %s9 = ssub.s32 1, %s7
  %s10 = scalar_select 0, %s9, %s7
  // Predicated region
  $region2: #{encoder_forward.3} parent=0 // pred_check
    _
  $region3: #{encoder_forward.3} parent=0 // pred_check_branch
    %12 = sbr.rel (0) target = $region5
  $region4: #{encoder_forward.3} parent=0 // pred_region
    _
  $region5: #{encoder_forward.3} parent=0 // pred_fallthru
    _
  // Predicated region
  $region6: #{encoder_forward.3} parent=0 // pred_check
    _
  $region7: #{encoder_forward.3} parent=0 // pred_check_branch
    %14 = sbr.rel (0) target = $region9
  $region8: #{encoder_forward.3} parent=0 // pred_region
    _
  $region9: #{encoder_forward.3} parent=0 // pred_fallthru
    _
  // Predicated region
  $region10: #{encoder_forward.3} parent=0 // pred_check
    _
  $region11: #{encoder_forward.3} parent=0 // pred_check_branch
    %16 = sbr.rel (0) target = $region13
  $region12: #{encoder_forward.3} parent=0 // pred_region
    _
  $region13: #{encoder_forward.3} parent=0 // pred_fallthru
    _
  // Predicated region
  $region14: #{encoder_forward.3} parent=0 // pred_check
    _
  $region15: #{encoder_forward.3} parent=0 // pred_check_branch
    %18 = sbr.rel (0) target = $region17
  $region16: #{encoder_forward.3} parent=0 // pred_region
    _
  $region17: #{encoder_forward.3} parent=0 // pred_fallthru
    _
  // Predicated region
  $region18: #{encoder_forward.3} parent=0 // pred_check
    _
  $region19: #{encoder_forward.3} parent=0 // pred_check_branch
    %20 = sbr.rel (0) target = $region21
  $region20: #{encoder_forward.3} parent=0 // pred_region
    _
  $region21: #{encoder_forward.3} parent=0 // pred_fallthru
    _
  // Predicated region
  $region22: #{encoder_forward.3} parent=0 // pred_check
    _
  $region23: #{encoder_forward.3} parent=0 // pred_check_branch
    %22 = sbr.rel (0) target = $region25
  $region24: #{encoder_forward.3} parent=0 // pred_region
    _
  $region25: #{encoder_forward.3} parent=0 // pred_fallthru
    _
  %v23 = vld [vmem:[%s0] sm:$0xff]
  %v24 = vld [vmem:[%s1] sm:$0xf]
  %v25 = vld [vmem:[%s1 + $0x4] sm:$0xf]
  %v26 = vld [vmem:[%s1 + $0x8] sm:$0xf]
  %v27 = vld [vmem:[%s1 + $0xc] sm:$0xf]
  %v28 = vld [vmem:[%s1 + $0x10] sm:$0xf]
  %v29 = vld [vmem:[%s1 + $0x14] sm:$0xf]
  %v30 = vld [vmem:[%s1 + $0x18] sm:$0xf]
  %v31 = vld [vmem:[%s1 + $0x1c] sm:$0xf]
  %v32 = vld [vmem:[%s1 + $0x20] sm:$0xf]
  %v33 = vld [vmem:[%s1 + $0x24] sm:$0xf]
  %v34 = vld [vmem:[%s1 + $0x28] sm:$0xf]
  %v35 = vld [vmem:[%s1 + $0x2c] sm:$0xf]
  %v36 = vld [vmem:[%s1 + $0x30] sm:$0xf]
  %v37 = vld [vmem:[%s1 + $0x34] sm:$0xf]
  %v38 = vld [vmem:[%s1 + $0x38] sm:$0xf]
  %v39 = vld [vmem:[%s1 + $0x3c] sm:$0xf]
  %v40 = vld [vmem:[%s1 + $0x40] sm:$0xf]
  %v41 = vld [vmem:[%s1 + $0x44] sm:$0xf]
  %v42 = vld [vmem:[%s1 + $0x48] sm:$0xf]
  %v43 = vld [vmem:[%s1 + $0x4c] sm:$0xf]
  %v44 = vld [vmem:[%s1 + $0x50] sm:$0xf]
  %v45 = vld [vmem:[%s1 + $0x54] sm:$0xf]
  %v46 = vld [vmem:[%s1 + $0x58] sm:$0xf]
  %v47 = vld [vmem:[%s1 + $0x5c] sm:$0xf]
  %v48 = vld [vmem:[%s1 + $0x60] sm:$0xf]
  %v49 = vld [vmem:[%s1 + $0x64] sm:$0xf]
  %v50 = vld [vmem:[%s1 + $0x68] sm:$0xf]
  %v51 = vld [vmem:[%s1 + $0x6c] sm:$0xf]
  %v52 = vld [vmem:[%s1 + $0x70] sm:$0xf]
  %v53 = vld [vmem:[%s1 + $0x74] sm:$0xf]
  %v54 = vld [vmem:[%s1 + $0x78] sm:$0xf]
  %v55 = vld [vmem:[%s1 + $0x7c] sm:$0xf]
  %v57 = vunpack.c.l.b16 %v23
  %v58 = vunpack.c.h.b16 %v23
  %v59 = vpack.c.b16 %v57, %v57
  %v60 = vpack.c.b16 %v58, %v58
  %v95 = vunpack.c.l.b16 %v24
  %v96 = vunpack.c.l.b16 %v25
  %v97 = vunpack.c.l.b16 %v26
  %v98 = vunpack.c.l.b16 %v27
  %v99 = vunpack.c.l.b16 %v28
  %v100 = vunpack.c.l.b16 %v29
  %v101 = vunpack.c.l.b16 %v30
  %v102 = vunpack.c.l.b16 %v31
  %v103 = vunpack.c.l.b16 %v32
  %v104 = vunpack.c.l.b16 %v33
  %v105 = vunpack.c.l.b16 %v34
  %v106 = vunpack.c.l.b16 %v35
  %v107 = vunpack.c.l.b16 %v36
  %v108 = vunpack.c.l.b16 %v37
  %v109 = vunpack.c.l.b16 %v38
  %v110 = vunpack.c.l.b16 %v39
  %v111 = vunpack.c.l.b16 %v40
  %v112 = vunpack.c.l.b16 %v41
  %v113 = vunpack.c.l.b16 %v42
  %v114 = vunpack.c.l.b16 %v43
  %v115 = vunpack.c.l.b16 %v44
  %v116 = vunpack.c.l.b16 %v45
  %v117 = vunpack.c.l.b16 %v46
  %v118 = vunpack.c.l.b16 %v47
  %v119 = vunpack.c.l.b16 %v48
  %v120 = vunpack.c.l.b16 %v49
  %v121 = vunpack.c.l.b16 %v50
  %v122 = vunpack.c.l.b16 %v51
  %v123 = vunpack.c.l.b16 %v52
  %v124 = vunpack.c.l.b16 %v53
  %v125 = vunpack.c.l.b16 %v54
  %v126 = vunpack.c.l.b16 %v55
  %v127 = vpack.c.b16 %v96, %v95
  %v128 = vpack.c.b16 %v98, %v97
  %v129 = vpack.c.b16 %v100, %v99
  %v130 = vpack.c.b16 %v102, %v101
  %v131 = vpack.c.b16 %v104, %v103
  %v132 = vpack.c.b16 %v106, %v105
  %v133 = vpack.c.b16 %v108, %v107
  %v134 = vpack.c.b16 %v110, %v109
  %v135 = vpack.c.b16 %v112, %v111
  %v136 = vpack.c.b16 %v114, %v113
  %v137 = vpack.c.b16 %v116, %v115
  %v138 = vpack.c.b16 %v118, %v117
  %v139 = vpack.c.b16 %v120, %v119
  %v140 = vpack.c.b16 %v122, %v121
  %v141 = vpack.c.b16 %v124, %v123
  %v142 = vpack.c.b16 %v126, %v125
  %159 = vmatpush.bf16.msra.mxu0 %v134
  %160 = vmatpush.bf16.msra.mxu0 %v133
  %161 = vmatpush.bf16.msra.mxu0 %v132
  %162 = vmatpush.bf16.msra.mxu0 %v131
  %163 = vmatpush.bf16.msra.mxu0 %v130
  %164 = vmatpush.bf16.msra.mxu0 %v129
  %165 = vmatpush.bf16.msra.mxu0 %v128
  %166 = vmatpush.bf16.msra.mxu0 %v127
  %167 = vmatmul.bf16.gmra.mxu0 %v59
  %v168 = vpop.f32.mrf.mxu0
  %v169 = vadd.f32 0.0, %v168
  %v170 = vpop.f32.mrf.mxu0
  %171 = vdwg.mxu0
  %172 = vmatpush.bf16.msra.mxu0 %v142
  %173 = vmatpush.bf16.msra.mxu0 %v141
  %174 = vmatpush.bf16.msra.mxu0 %v140
  %175 = vmatpush.bf16.msra.mxu0 %v139
  %176 = vmatpush.bf16.msra.mxu0 %v138
  %177 = vmatpush.bf16.msra.mxu0 %v137
  %178 = vmatpush.bf16.msra.mxu0 %v136
  %179 = vmatpush.bf16.msra.mxu0 %v135
  %180 = vmatmul.bf16.gmra.mxu0 %v60
  %v181 = vpop.f32.mrf.mxu0
  %v182 = vadd.f32 %v169, %v181
  %v183 = vpop.f32.mrf.mxu0
  %184 = vdwg.mxu0
  %v185 = vld [vmem:[%s2] sm:$0x1]
  %v186 = vld [vmem:[%s3] sm:$0x1]
  %v187 = vrot.slane %v182, 4
  %v188 = vadd.f32 %v182, %v187
  %v189 = vrot.slane %v188, 2
  %v190 = vadd.f32 %v188, %v189
  %v191 = vrot.slane %v190, 1
  %v192 = vadd.f32 %v190, %v191
  %v193 = vmul.f32 %v192, 0.5
  %v194 = vsub.f32 %v182, %v193
  %v195 = vlaneseq
  %v196 = vshrl.u32 %v195, 7
  %vm197 = vcmp.lt.s32.totalorder %v196, 2
  %v198 = vsel %vm197, %v194, 0.0
  %v199 = vmul.f32 %v198, %v198
  %v200 = vrot.slane %v199, 4
  %v201 = vadd.f32 %v199, %v200
  %v202 = vrot.slane %v201, 2
  %v203 = vadd.f32 %v201, %v202
  %v204 = vrot.slane %v203, 1
  %v205 = vadd.f32 %v203, %v204
  %v206 = vmul.f32 %v205, 0.5
  %v207 = vadd.f32 %v206, 1e-05
  %v208 = vrsqrt.pop %v207
  %v209 = vmul.f32 %v208, %v207
  %v210 = vmul.f32 %v209, %v208
  %v211 = vmul.f32 0.5, %v210
  %v212 = vsub.f32 1.5, %v211
  %v213 = vmul.f32 %v208, %v212
  %vm214 = vweird.f32 %v207
  %vm215 = vweird.f32 %v208
  %vm216 = vmor %vm214, %vm215
  %v217 = vsel %vm216, %v208, %v213
  %v218 = vmul.f32 %v185, %v217
  %v219 = vmul.f32 %v193, %v218
  %v220 = vsub.f32 %v186, %v219
  %v222 = vperm.slane %v218, 0
  %v224 = vmul.f32 %v182, %v222
  %v226 = vperm.slane %v220, 0
  %v228 = vadd.f32 %v224, %v226
  %v229 = vmax.f32 %v228, 0.0
  %v230 = vpack.c.bf16 %v229, %v229
  %v231 = vld [vmem:[%s4] sm:$0xf]
  %v232 = vld [vmem:[%s4 + $0x4] sm:$0xf]
  %v233 = vld [vmem:[%s4 + $0x8] sm:$0xf]
  %v234 = vld [vmem:[%s4 + $0xc] sm:$0xf]
  %v235 = vld [vmem:[%s4 + $0x10] sm:$0xf]
  %v236 = vld [vmem:[%s4 + $0x14] sm:$0xf]
  %v237 = vld [vmem:[%s4 + $0x18] sm:$0xf]
  %v238 = vld [vmem:[%s4 + $0x1c] sm:$0xf]
  %v239 = vld [vmem:[%s4 + $0x20] sm:$0xf]
  %v240 = vld [vmem:[%s4 + $0x24] sm:$0xf]
  %v241 = vld [vmem:[%s4 + $0x28] sm:$0xf]
  %v242 = vld [vmem:[%s4 + $0x2c] sm:$0xf]
  %v243 = vld [vmem:[%s4 + $0x30] sm:$0xf]
  %v244 = vld [vmem:[%s4 + $0x34] sm:$0xf]
  %v245 = vld [vmem:[%s4 + $0x38] sm:$0xf]
  %v246 = vld [vmem:[%s4 + $0x3c] sm:$0xf]
  %v247 = vld [vmem:[%s5] sm:$0x1]
  %v249 = vperm.slane %v247, 0
  %v267 = vunpack.c.l.b16 %v231
  %v268 = vunpack.c.l.b16 %v232
  %v269 = vunpack.c.l.b16 %v233
  %v270 = vunpack.c.l.b16 %v234
  %v271 = vunpack.c.l.b16 %v235
  %v272 = vunpack.c.l.b16 %v236
  %v273 = vunpack.c.l.b16 %v237
  %v274 = vunpack.c.l.b16 %v238
  %v275 = vunpack.c.l.b16 %v239
  %v276 = vunpack.c.l.b16 %v240
  %v277 = vunpack.c.l.b16 %v241
  %v278 = vunpack.c.l.b16 %v242
  %v279 = vunpack.c.l.b16 %v243
  %v280 = vunpack.c.l.b16 %v244
  %v281 = vunpack.c.l.b16 %v245
  %v282 = vunpack.c.l.b16 %v246
  %v283 = vpack.c.b16 %v268, %v267
  %v284 = vpack.c.b16 %v270, %v269
  %v285 = vpack.c.b16 %v272, %v271
  %v286 = vpack.c.b16 %v274, %v273
  %v287 = vpack.c.b16 %v276, %v275
  %v288 = vpack.c.b16 %v278, %v277
  %v289 = vpack.c.b16 %v280, %v279
  %v290 = vpack.c.b16 %v282, %v281
  %299 = vmatpush.bf16.msra.mxu0 %v290
  %300 = vmatpush.bf16.msra.mxu0 %v289
  %301 = vmatpush.bf16.msra.mxu0 %v288
  %302 = vmatpush.bf16.msra.mxu0 %v287
  %303 = vmatpush.bf16.msra.mxu0 %v286
  %304 = vmatpush.bf16.msra.mxu0 %v285
  %305 = vmatpush.bf16.msra.mxu0 %v284
  %306 = vmatpush.bf16.msra.mxu0 %v283
  %307 = vmatmul.bf16.gmra.mxu0 %v230
  %v308 = vpop.f32.mrf.mxu0
  %v309 = vadd.f32 %v249, %v308
  %v310 = vpop.f32.mrf.mxu0
  %311 = vdwg.mxu0
  %312 = vst [vmem:[%s6] sm:$0xff] %v309
  // Predicated region
  $region26: #{encoder_forward.3} parent=0 // pred_check
    _
  $region27: #{encoder_forward.3} parent=0 // pred_check_branch
    %314 = sbr.rel (0) target = $region29
  $region28: #{encoder_forward.3} parent=0 // pred_region
    _
  $region29: #{encoder_forward.3} parent=0 // pred_fallthru
    _
  // Predicated region
  $region30: #{encoder_forward.3} parent=0 // pred_check
    _
  $region31: #{encoder_forward.3} parent=0 // pred_check_branch
    %316 = sbr.rel (0) target = $region33
  $region32: #{encoder_forward.3} parent=0 // pred_region
    _
  $region33: #{encoder_forward.3} parent=0 // pred_fallthru
    _

</llo_original>
